<compile_context>
chip_gen: v6e
topology: v6e:2x2x1
jax: 0.10.0
libtpu: 0.0.40
codegen_flags: <defaults>
</compile_context>

<pallas_src>
import numpy as np
import jax
import jax.numpy as jnp
from jax.experimental import pallas as pl
from jax.experimental.pallas import tpu as pltpu

DIM = 6                 # phase-space dimension [x, px, y, py, z, pz]
N_ELEM = 8              # number of synthetic lattice elements
TARGET_TILE_N = 65536   # particles per grid step (lane axis), multiple of 128


def make_lattice_matrices() -> np.ndarray:
    """Deterministic synthetic lattice: alternating drift / thin-quad 6x6 maps."""
    mats = []
    for i in range(N_ELEM):
        R = np.eye(DIM, dtype=np.float64)
        if i % 2 == 0:                      # drift of length Ld
            Ld = 0.5 + 0.1 * i
            R[0, 1] = Ld                    # x  += Ld * px
            R[2, 3] = Ld                    # y  += Ld * py
            R[4, 5] = 0.01 * Ld             # weak longitudinal coupling
        else:                               # thin quadrupole, strength k
            k = ((-1) ** (i // 2)) * (0.8 + 0.05 * i)
            R[1, 0] = -k                    # px += -k * x
            R[3, 2] = +k                    # py += +k * y
        mats.append(R)
    return np.stack(mats, axis=0)


def compose_lattice(mats: np.ndarray) -> np.ndarray:
    """R_total = R_{L-1} @ ... @ R_0  (element 0 is applied first)."""
    R = np.eye(DIM, dtype=np.float64)
    for m in mats:
        R = m @ R
    return R.astype(np.float32)


def _round_up(v: int, m: int) -> int:
    return ((v + m - 1) // m) * m


def _pick_tile_n(n: int) -> int:
    """Pick the particle-tile width.

    Big tiles amortize the ~0.35 us per-grid-step overhead (-> HBM roofline),
    capped so (a) in+out double-buffered tiles stay well under every
    generation's scoped-VMEM default (v5e: 16 MiB) and (b) the grid has >= 2
    steps so v7x megacore can shard work across its two TensorCores.
    """
    tile = min(TARGET_TILE_N, _round_up(pl.cdiv(n, 2), 128))
    return max(tile, 128)


def lattice_kernel(r_ref, x_ref, o_ref):
    # r_ref: (6, 6) f32 in VMEM -- composed map R_total; same block index every
    #        grid step, so Pallas keeps it resident (no re-DMA).
    # x_ref / o_ref: (6, TILE_N) coordinate-major beam tile (particles on the
    #        128-lane axis -> lane-dense loads and stores).
    #
    # y = R @ x as a sum of 6 rank-1 broadcast products, all dense (6, TILE_N)
    # VPU ops on a single accumulator: exact f32, no per-row sublane
    # accumulators, no concatenate relayout before the store.
    x = x_ref[...]                     # (6, TILE_N) f32
    r = r_ref[...]                     # (6, 6) f32
    acc = r[:, 0:1] * x[0:1, :]        # (6,1)*(1,T) -> (6,T)
    for k in range(1, DIM):
        acc = acc + r[:, k:k + 1] * x[k:k + 1, :]
    o_ref[...] = acc                   # single lane-dense store


def apply_lattice_cm(x_cm: jax.Array, r_total: jax.Array) -> jax.Array:
    """Coordinate-major fast path: x_cm (6, N) f32 -> (6, N) f32 after the lattice."""
    n = x_cm.shape[1]
    tile_n = _pick_tile_n(n)
    n_pad = pl.cdiv(n, tile_n) * tile_n
    if n_pad != n:
        # TODO(synk): allocate the beam at a tile_n multiple upstream to avoid
        # this extra HBM pass (never taken in the demo below).
        x_cm = jnp.pad(x_cm, ((0, 0), (0, n_pad - n)))

    grid = (n_pad // tile_n,)
    out = pl.pallas_call(
        lattice_kernel,
        out_shape=jax.ShapeDtypeStruct((DIM, n_pad), jnp.float32),
        grid_spec=pltpu.PrefetchScalarGridSpec(
            num_scalar_prefetch=0,
            grid=grid,
            in_specs=[
                pl.BlockSpec((DIM, DIM), lambda i: (0, 0)),      # R_total, resident
                pl.BlockSpec((DIM, tile_n), lambda i: (0, i)),   # beam tile
            ],
            out_specs=pl.BlockSpec((DIM, tile_n), lambda i: (0, i)),
        ),
        compiler_params=pltpu.CompilerParams(
            # "parallel" lets v7x megacore shard the >=2 grid steps across its
            # two TensorCores; it is a no-op (and harmless) on v5e / v6e.
            dimension_semantics=("parallel",)),
    )(r_total, x_cm)

    return out[:, :n] if n_pad != n else out


def lattice_transform(x: jax.Array, r_total: jax.Array) -> jax.Array:
    """Module-parity wrapper: (N, 6) -> (N, 6), matching TorchLatticeTransform.

    The transposes here are API-parity layout plumbing only; in a real
    pipeline keep the beam coordinate-major and call apply_lattice_cm.
    """
    return apply_lattice_cm(x.T, r_total).T


def lattice_transform_ref(x: jax.Array, mats: jax.Array) -> jax.Array:
    """Plain-JAX reference: sequential application of the element maps.

    Implemented with broadcast-multiply + sum (no MXU matmul) so the reference
    itself is exact f32 regardless of the backend's default matmul precision.
    """
    state = x
    for l in range(mats.shape[0]):
        R = mats[l]
        # y[n, c] = sum_k R[c, k] * x[n, k]   (== x @ R^T)
        state = jnp.sum(R[None, :, :] * state[:, None, :], axis=-1)
    return state


if __name__ == "__main__":
    key = jax.random.PRNGKey(0)
    N = 2048                                   # small demo beam (2 grid steps)
    # Beam coordinates: small deterministic phase-space distribution, (N, 6)
    # as the Torch module expects.
    x = 1e-3 * jax.random.normal(key, (N, DIM), dtype=jnp.float32)

    mats_np = make_lattice_matrices()
    mats = jnp.asarray(mats_np.astype(np.float32))
    r_total = jnp.asarray(compose_lattice(mats_np))

    # One-time layout at "beam creation": coordinate-major (6, N).
    x_cm = x.T

    # Fast coordinate-major path (the one a real pipeline should use).
    y_cm = apply_lattice_cm(x_cm, r_total)
    jax.block_until_ready(y_cm)

    # Module-parity (N, 6) -> (N, 6) path.
    y_api = lattice_transform(x, r_total)
    jax.block_until_ready(y_api)

    y_ref = lattice_transform_ref(x, mats)
    assert y_cm.shape == (DIM, N)
    assert y_api.shape == (N, DIM)
    np.testing.assert_allclose(np.asarray(y_cm.T), np.asarray(y_ref),
                               rtol=1e-5, atol=1e-8)
    np.testing.assert_allclose(np.asarray(y_api), np.asarray(y_ref),
                               rtol=1e-5, atol=1e-8)
    print("KERNEL_OK")
</pallas_src>

<mosaic_0001>
module attributes {stable_mosaic.version = 11 : i64} {
  func.func @lattice_kernel(%arg0: i32, %arg1: memref<6x6xf32, #tpu.memory_space<vmem>>, %arg2: memref<6x1024xf32, #tpu.memory_space<vmem>>, %arg3: memref<6x1024xf32, #tpu.memory_space<vmem>>) attributes {dimension_semantics = [#tpu.dimension_semantics<parallel>], iteration_bounds = array<i64: 2>, scalar_prefetch = 0 : i64, scratch_operands = 0 : i64, tpu.core_type = #tpu.core_type<tc>, window_params = [{pipeline_mode = #tpu.pipeline_mode<synchronous>, transform_indices = @transform_0, window_bounds = array<i64: 6, 6>}, {transform_indices = @transform_1, window_bounds = array<i64: 6, 1024>}, {transform_indices = @transform_2, window_bounds = array<i64: 6, 1024>}]} {
    %c0 = arith.constant 0 : index
    %c0_0 = arith.constant 0 : index
    %0 = vector.load %arg2[%c0, %c0_0] : memref<6x1024xf32, #tpu.memory_space<vmem>>, vector<6x1024xf32>
    %c0_1 = arith.constant 0 : index
    %c0_2 = arith.constant 0 : index
    %1 = vector.load %arg1[%c0_1, %c0_2] : memref<6x6xf32, #tpu.memory_space<vmem>>, vector<6x6xf32>
    %2 = vector.extract_strided_slice %1 {offsets = [0, 0], sizes = [6, 1], strides = [1, 1]} : vector<6x6xf32> to vector<6x1xf32>
    %3 = vector.extract_strided_slice %0 {offsets = [0, 0], sizes = [1, 1024], strides = [1, 1]} : vector<6x1024xf32> to vector<1x1024xf32>
    %4 = vector.broadcast %2 : vector<6x1xf32> to vector<6x1024xf32>
    %5 = vector.broadcast %3 : vector<1x1024xf32> to vector<6x1024xf32>
    %6 = arith.mulf %4, %5 : vector<6x1024xf32>
    %7 = vector.extract_strided_slice %1 {offsets = [0, 1], sizes = [6, 1], strides = [1, 1]} : vector<6x6xf32> to vector<6x1xf32>
    %8 = vector.extract_strided_slice %0 {offsets = [1, 0], sizes = [1, 1024], strides = [1, 1]} : vector<6x1024xf32> to vector<1x1024xf32>
    %9 = vector.broadcast %7 : vector<6x1xf32> to vector<6x1024xf32>
    %10 = vector.broadcast %8 : vector<1x1024xf32> to vector<6x1024xf32>
    %11 = arith.mulf %9, %10 : vector<6x1024xf32>
    %12 = arith.addf %6, %11 : vector<6x1024xf32>
    %13 = vector.extract_strided_slice %1 {offsets = [0, 2], sizes = [6, 1], strides = [1, 1]} : vector<6x6xf32> to vector<6x1xf32>
    %14 = vector.extract_strided_slice %0 {offsets = [2, 0], sizes = [1, 1024], strides = [1, 1]} : vector<6x1024xf32> to vector<1x1024xf32>
    %15 = vector.broadcast %13 : vector<6x1xf32> to vector<6x1024xf32>
    %16 = vector.broadcast %14 : vector<1x1024xf32> to vector<6x1024xf32>
    %17 = arith.mulf %15, %16 : vector<6x1024xf32>
    %18 = arith.addf %12, %17 : vector<6x1024xf32>
    %19 = vector.extract_strided_slice %1 {offsets = [0, 3], sizes = [6, 1], strides = [1, 1]} : vector<6x6xf32> to vector<6x1xf32>
    %20 = vector.extract_strided_slice %0 {offsets = [3, 0], sizes = [1, 1024], strides = [1, 1]} : vector<6x1024xf32> to vector<1x1024xf32>
    %21 = vector.broadcast %19 : vector<6x1xf32> to vector<6x1024xf32>
    %22 = vector.broadcast %20 : vector<1x1024xf32> to vector<6x1024xf32>
    %23 = arith.mulf %21, %22 : vector<6x1024xf32>
    %24 = arith.addf %18, %23 : vector<6x1024xf32>
    %25 = vector.extract_strided_slice %1 {offsets = [0, 4], sizes = [6, 1], strides = [1, 1]} : vector<6x6xf32> to vector<6x1xf32>
    %26 = vector.extract_strided_slice %0 {offsets = [4, 0], sizes = [1, 1024], strides = [1, 1]} : vector<6x1024xf32> to vector<1x1024xf32>
    %27 = vector.broadcast %25 : vector<6x1xf32> to vector<6x1024xf32>
    %28 = vector.broadcast %26 : vector<1x1024xf32> to vector<6x1024xf32>
    %29 = arith.mulf %27, %28 : vector<6x1024xf32>
    %30 = arith.addf %24, %29 : vector<6x1024xf32>
    %31 = vector.extract_strided_slice %1 {offsets = [0, 5], sizes = [6, 1], strides = [1, 1]} : vector<6x6xf32> to vector<6x1xf32>
    %32 = vector.extract_strided_slice %0 {offsets = [5, 0], sizes = [1, 1024], strides = [1, 1]} : vector<6x1024xf32> to vector<1x1024xf32>
    %33 = vector.broadcast %31 : vector<6x1xf32> to vector<6x1024xf32>
    %34 = vector.broadcast %32 : vector<1x1024xf32> to vector<6x1024xf32>
    %35 = arith.mulf %33, %34 : vector<6x1024xf32>
    %36 = arith.addf %30, %35 : vector<6x1024xf32>
    %c0_3 = arith.constant 0 : index
    %c0_4 = arith.constant 0 : index
    %37 = vector.load %arg3[%c0_3, %c0_4] : memref<6x1024xf32, #tpu.memory_space<vmem>>, vector<6x1024xf32>
    tpu.vector_store %arg3[%c0_3, %c0_4], %36 {strides = array<i32>} : memref<6x1024xf32, #tpu.memory_space<vmem>>, vector<6x1024xf32>,
    return
  }
  func.func @transform_0(%arg0: i32) -> (i32, i32) {
    %c0_i32 = arith.constant 0 : i32
    %c0_i32_0 = arith.constant 0 : i32
    %c0_i32_1 = arith.constant 0 : i32
    return %c0_i32, %c0_i32_0 : i32, i32
  }
  func.func @transform_1(%arg0: i32) -> (i32, i32) {
    %c0_i32 = arith.constant 0 : i32
    %c0_i32_0 = arith.constant 0 : i32
    return %c0_i32, %arg0 : i32, i32
  }
  func.func @transform_2(%arg0: i32) -> (i32, i32) {
    %c0_i32 = arith.constant 0 : i32
    %c0_i32_0 = arith.constant 0 : i32
    return %c0_i32, %arg0 : i32, i32
  }
}

</mosaic_0001>

<llo_original>
// kernel: tpu_custom_call.1
$region0: #{tpu_custom_call.1}
  #allocation0 [shape = 'u32[]', space=smem, size = 0x4, offset = 0x4, fixed_abs, tag = 'smem constant byte address 0x4 - core index']
  #allocation1 [shape = 'u32[144,128]{1,0:T(1,128)}', space=vmem, size = 0x12000, scoped, tag = 'internal scratch']
  %s0 = inlined_call_operand.hbm [shape: f32[6,6], index: 0, kind: input, shape index: {}]
  %s1 = inlined_call_operand.hbm [shape: f32[6,2048], index: 1, kind: input, shape index: {}]
  %s2 = inlined_call_operand.hbm [shape: f32[6,2048], index: 2, kind: output, shape index: {}]
  %s3 = sld [smem:[#allocation0]]
  $region49: #{tpu_custom_call.1} parent=0
    _
  %s5 = ssub.s32 1, %s3
  %s6 = scalar_select 0, %s5, %s3
  $region1: #{tpu_custom_call.1} parent=0
    #allocation2 [shape = 'u8[4096]{0}', space=vmem, size = 0x1000, scoped, tag = 'input window, operand 0, single buffered']
    #allocation3 [shape = 's32[2]{0}', space=sflag, size = 0x8, scoped, tag = 'scoped memory for tpu_custom_call.1']
    #allocation4 [shape = 's32[2]{0}', space=sflag, size = 0x8, scoped, tag = 'scoped memory for tpu_custom_call.1']
    #allocation5 [shape = 'u8[65536]{0}', space=vmem, size = 0x10000, scoped, tag = 'input window, operand 1']
    #allocation6 [shape = 's32[2]{0}', space=sflag, size = 0x8, scoped, tag = 'scoped memory for tpu_custom_call.1']
    #allocation7 [shape = 'u8[65536]{0}', space=vmem, size = 0x10000, scoped, tag = 'output window, operand 0']
    %7 = vsyncpa [#allocation3], 0
    %8 = vsyncpa [#allocation6], 0
    %s9 = scalar_lea.sflag [#allocation6], 1
    %10 = vsyncpa %s9, 0
    %11 = vsyncpa [#allocation4], 0
    %s12 = scalar_lea.sflag [#allocation4], 1
    %13 = vsyncpa %s12, 0
    loop: start=0, step=1, limit=4
    $region2: #{tpu_custom_call.1} parent=1 // loop_pre_header
      _
    $region3: #{tpu_custom_call.1} parent=1 // loop_header
      %s15 = sphi 0, %s19
      %p16 = scmp.ge.s32.totalorder %s15, 4
      %s23 = sphi 0, %s23
      %s25 = sphi 0, %s23
      %s26 = sphi 0, %s25
      %s40 = sphi 0, %s26
      %s46 = sphi 0, %s48
      %s49 = sphi 0, %s46
      %s50 = sphi 0, %s49
      %s66 = sphi 0, %s50
      %s72 = sphi 0, %s74
      %s75 = sphi 0, %s72
      %s76 = sphi 0, %s75
      %s92 = sphi 0, %s76
    $region4: #{tpu_custom_call.1} parent=1 // loop_header_branch
      %18 = sbr.rel (%p16) target = $region8
    $region5: #{tpu_custom_call.1} parent=1 // loop_body
      %s20 = ssub.s32 %s15, 1
      %s21 = ssub.s32 %s15, 2
      %s22 = sadd.s32 %s15, 1
      %s24 = sadd.s32 %s23, 1
      %p27 = scmp.eq.s32.totalorder %s15, 1
      %p28 = scmp.ne.s32.totalorder %s23, %s25
      %p29 = scmp.eq.s32.totalorder %s15, 0
      %p30 = por %p28, %p29
      %p31 = scmp.ne.s32.totalorder %s23, %s25
      %p32 = scmp.eq.s32.totalorder %s20, 1
      %p33 = por %p31, %p32
      %p34 = scmp.ne.s32.totalorder %s25, %s26
      %p35 = scmp.eq.s32.totalorder %s20, 0
      %p36 = por %p34, %p35
      %p37 = scmp.ne.s32.totalorder %s25, %s26
      %p38 = scmp.eq.s32.totalorder %s21, 1
      %p39 = por %p37, %p38
      %p41 = scmp.ne.s32.totalorder %s26, %s40
      %p42 = scmp.eq.s32.totalorder %s21, 0
      %p43 = por %p41, %p42
      %s44 = ssub.s32 %s15, %s22
      %p45 = scmp.eq.s32.totalorder %s44, 0
      %s47 = sadd.s32 %s46, 1
      %s48 = scalar_select %p45, %s46, %s47
      %p51 = pneg %p45
      %p52 = scmp.eq.s32.totalorder %s15, 1
      %p53 = por %p51, %p52
      %p54 = scmp.ne.s32.totalorder %s46, %s49
      %p55 = scmp.eq.s32.totalorder %s15, 0
      %p56 = por %p54, %p55
      %p57 = scmp.ne.s32.totalorder %s46, %s49
      %p58 = scmp.eq.s32.totalorder %s20, 1
      %p59 = por %p57, %p58
      %p60 = scmp.ne.s32.totalorder %s49, %s50
      %p61 = scmp.eq.s32.totalorder %s20, 0
      %p62 = por %p60, %p61
      %p63 = scmp.ne.s32.totalorder %s49, %s50
      %p64 = scmp.eq.s32.totalorder %s21, 1
      %p65 = por %p63, %p64
      %p67 = scmp.ne.s32.totalorder %s50, %s66
      %p68 = scmp.eq.s32.totalorder %s21, 0
      %p69 = por %p67, %p68
      %s70 = ssub.s32 %s15, %s22
      %p71 = scmp.eq.s32.totalorder %s70, 0
      %s73 = sadd.s32 %s72, 1
      %s74 = scalar_select %p71, %s72, %s73
      %p77 = pneg %p71
      %p78 = scmp.eq.s32.totalorder %s15, 1
      %p79 = por %p77, %p78
      %p80 = scmp.ne.s32.totalorder %s72, %s75
      %p81 = scmp.eq.s32.totalorder %s15, 0
      %p82 = por %p80, %p81
      %p83 = scmp.ne.s32.totalorder %s72, %s75
      %p84 = scmp.eq.s32.totalorder %s20, 1
      %p85 = por %p83, %p84
      %p86 = scmp.ne.s32.totalorder %s75, %s76
      %p87 = scmp.eq.s32.totalorder %s20, 0
      %p88 = por %p86, %p87
      %p89 = scmp.ne.s32.totalorder %s75, %s76
      %p90 = scmp.eq.s32.totalorder %s21, 1
      %p91 = por %p89, %p90
      %p93 = scmp.ne.s32.totalorder %s76, %s92
      %p94 = scmp.eq.s32.totalorder %s21, 0
      %p95 = por %p93, %p94
      %p96 = scmp.le.s32.totalorder 1, %s15
      %p97 = scmp.lt.s32.totalorder %s15, 3
      %p98 = pnand %p96, %p97
      %p99 = pneg %p98
      // Predicated region
      $region9: #{tpu_custom_call.1} parent=5 // pred_check
        _
      $region10: #{tpu_custom_call.1} parent=5 // pred_check_branch
        %101 = sbr.rel (%p98) target = $region12
      $region11: #{tpu_custom_call.1} parent=5 // pred_region
        %s102 = ssub.s32 %s15, 1
        // Predicated region
        $region13: #{tpu_custom_call.1} parent=11 // pred_check
          %p103 = pneg %p36
        $region14: #{tpu_custom_call.1} parent=11 // pred_check_branch
          %105 = sbr.rel (%p103) target = $region16
        $region15: #{tpu_custom_call.1} parent=11 // pred_region
          %s107 = ssub.s32 128, 128
          %108 = vsyncadd [#allocation3], %s107
          %s110 = sshll.u32 [#allocation2], 4
          %s111 = int_to_ptr.vmem [resolvable:$true] %s110
          %113 = dma.hbm_to_vmem [thread:$0]  %s0, 128, %s111, [#allocation3]
        $region16: #{tpu_custom_call.1} parent=11 // pred_fallthru
          _
      $region12: #{tpu_custom_call.1} parent=5 // pred_fallthru
        _
      %p114 = scmp.lt.s32.totalorder %s15, 2
      // Predicated region
      $region17: #{tpu_custom_call.1} parent=5 // pred_check
        %p115 = pneg %p114
      $region18: #{tpu_custom_call.1} parent=5 // pred_check_branch
        %117 = sbr.rel (%p115) target = $region20
      $region19: #{tpu_custom_call.1} parent=5 // pred_region
        // Predicated region
        $region21: #{tpu_custom_call.1} parent=19 // pred_check
          %p118 = pneg %p56
        $region22: #{tpu_custom_call.1} parent=19 // pred_check_branch
          %120 = sbr.rel (%p118) target = $region24
        $region23: #{tpu_custom_call.1} parent=19 // pred_region
          %s121 = sand.u32 %s46, 1
          %s122 = scalar_lea.sflag [#allocation6], %s121
          %s123 = sand.u32 %s46, 1
          %s124 = smul.addr %s123, 64
          %s125 = scalar_lea.vmem [#allocation5], %s124
          %s126 = smul.u32 8, %s15
          %s128 = ssub.s32 1024, 1024
          %129 = vsyncadd %s122, %s128
          %s130 = smul.addr %s126, 128
          %s131 = scalar_lea.hbm %s1, %s130
          %s133 = sshll.u32 %s125, 4
          %s134 = int_to_ptr.vmem [resolvable:$true] %s133
          %136 = dma.hbm_to_vmem [thread:$0]  %s131, 1024, %s134, %s122
        $region24: #{tpu_custom_call.1} parent=19 // pred_fallthru
          _
      $region20: #{tpu_custom_call.1} parent=5 // pred_fallthru
        _
      %p137 = scmp.le.s32.totalorder 1, %s15
      %p138 = scmp.lt.s32.totalorder %s15, 3
      %p139 = pnand %p137, %p138
      %p140 = pneg %p139
      // Predicated region
      $region25: #{tpu_custom_call.1} parent=5 // pred_check
        _
      $region26: #{tpu_custom_call.1} parent=5 // pred_check_branch
        %142 = sbr.rel (%p139) target = $region28
      $region27: #{tpu_custom_call.1} parent=5 // pred_region
        %s143 = ssub.s32 %s15, 1
        // Predicated region
        $region29: #{tpu_custom_call.1} parent=27 // pred_check
          %p144 = pneg %p36
        $region30: #{tpu_custom_call.1} parent=27 // pred_check_branch
          %146 = sbr.rel (%p144) target = $region32
        $region31: #{tpu_custom_call.1} parent=27 // pred_region
          %147 = dma.done [#allocation3], 128
        $region32: #{tpu_custom_call.1} parent=27 // pred_fallthru
          _
        %s148 = sand.u32 %s49, 1
        %s149 = scalar_lea.sflag [#allocation6], %s148
        %s150 = sand.u32 %s49, 1
        %s151 = smul.addr %s150, 64
        %s152 = scalar_lea.vmem [#allocation5], %s151
        // Predicated region
        $region33: #{tpu_custom_call.1} parent=27 // pred_check
          %p153 = pneg %p62
        $region34: #{tpu_custom_call.1} parent=27 // pred_check_branch
          %155 = sbr.rel (%p153) target = $region36
        $region35: #{tpu_custom_call.1} parent=27 // pred_region
          %156 = dma.done %s149, 1024
        $region36: #{tpu_custom_call.1} parent=27 // pred_fallthru
          _
        %p157 = pneg %p36
        %p158 = pneg %p33
        %s159 = sand.u32 %s49, 1
        %s160 = scalar_lea.sflag [#allocation6], %s159
        %s161 = sand.u32 %s49, 1
        %s162 = smul.addr %s161, 64
        %s163 = scalar_lea.vmem [#allocation5], %s162
        %p164 = pneg %p62
        %p165 = pneg %p59
        %p166 = pneg %p88
        %p167 = pneg %p85
        %s168 = sand.u32 %s75, 1
        %s169 = scalar_lea.sflag [#allocation4], %s168
        %s170 = sand.u32 %s75, 1
        %s171 = smul.addr %s170, 64
        %s172 = scalar_lea.vmem [#allocation7], %s171
        %s173 = smul.u32 8, %s20
        %s174 = smul.u32 8, %s20
        %v175 = vld [vmem:[%s152] sm:$0x3f]
        %v176 = vld [vmem:[%s152 + $0x8] sm:$0x3f]
        %v177 = vld [vmem:[%s152 + $0x10] sm:$0x3f]
        %v178 = vld [vmem:[%s152 + $0x18] sm:$0x3f]
        %v179 = vld [vmem:[%s152 + $0x20] sm:$0x3f]
        %v180 = vld [vmem:[%s152 + $0x28] sm:$0x3f]
        %v181 = vld [vmem:[%s152 + $0x30] sm:$0x3f]
        %v182 = vld [vmem:[%s152 + $0x38] sm:$0x3f]
        %v183 = vld [vmem:[#allocation2] sm:$0x3f]
        %185 = vset.pattern.permute.xlu0 0
        %186 = vperm.xlu0 %185, %v183
        %v187 = vpop.permute.xlu0 %186
        %v189 = vlaneseq
        %v190 = vshrl.u32 %v189, 7
        %v191 = vsub.s32 0, %v190
        %v192 = vrot.slane %v175, %v191
        %v193 = vlaneseq
        %v194 = vshrl.u32 %v193, 7
        %v195 = vsub.s32 0, %v194
        %v196 = vrot.slane %v176, %v195
        %v197 = vlaneseq
        %v198 = vshrl.u32 %v197, 7
        %v199 = vsub.s32 0, %v198
        %v200 = vrot.slane %v177, %v199
        %v201 = vlaneseq
        %v202 = vshrl.u32 %v201, 7
        %v203 = vsub.s32 0, %v202
        %v204 = vrot.slane %v178, %v203
        %v205 = vlaneseq
        %v206 = vshrl.u32 %v205, 7
        %v207 = vsub.s32 0, %v206
        %v208 = vrot.slane %v179, %v207
        %v209 = vlaneseq
        %v210 = vshrl.u32 %v209, 7
        %v211 = vsub.s32 0, %v210
        %v212 = vrot.slane %v180, %v211
        %v213 = vlaneseq
        %v214 = vshrl.u32 %v213, 7
        %v215 = vsub.s32 0, %v214
        %v216 = vrot.slane %v181, %v215
        %v217 = vlaneseq
        %v218 = vshrl.u32 %v217, 7
        %v219 = vsub.s32 0, %v218
        %v220 = vrot.slane %v182, %v219
        %v221 = vmul.f32 %v187, %v192
        %v222 = vmul.f32 %v187, %v196
        %v223 = vmul.f32 %v187, %v200
        %v224 = vmul.f32 %v187, %v204
        %v225 = vmul.f32 %v187, %v208
        %v226 = vmul.f32 %v187, %v212
        %v227 = vmul.f32 %v187, %v216
        %v228 = vmul.f32 %v187, %v220
        %229 = vset.pattern.permute.xlu0 1
        %230 = vperm.xlu0 %229, %v183
        %v231 = vpop.permute.xlu0 %230
        %v233 = vlaneseq
        %v234 = vshrl.u32 %v233, 7
        %v235 = vsub.s32 1, %v234
        %v236 = vrot.slane %v175, %v235
        %v237 = vlaneseq
        %v238 = vshrl.u32 %v237, 7
        %v239 = vsub.s32 1, %v238
        %v240 = vrot.slane %v176, %v239
        %v241 = vlaneseq
        %v242 = vshrl.u32 %v241, 7
        %v243 = vsub.s32 1, %v242
        %v244 = vrot.slane %v177, %v243
        %v245 = vlaneseq
        %v246 = vshrl.u32 %v245, 7
        %v247 = vsub.s32 1, %v246
        %v248 = vrot.slane %v178, %v247
        %v249 = vlaneseq
        %v250 = vshrl.u32 %v249, 7
        %v251 = vsub.s32 1, %v250
        %v252 = vrot.slane %v179, %v251
        %v253 = vlaneseq
        %v254 = vshrl.u32 %v253, 7
        %v255 = vsub.s32 1, %v254
        %v256 = vrot.slane %v180, %v255
        %v257 = vlaneseq
        %v258 = vshrl.u32 %v257, 7
        %v259 = vsub.s32 1, %v258
        %v260 = vrot.slane %v181, %v259
        %v261 = vlaneseq
        %v262 = vshrl.u32 %v261, 7
        %v263 = vsub.s32 1, %v262
        %v264 = vrot.slane %v182, %v263
        %v265 = vmul.f32 %v231, %v236
        %v266 = vmul.f32 %v231, %v240
        %v267 = vmul.f32 %v231, %v244
        %v268 = vmul.f32 %v231, %v248
        %v269 = vmul.f32 %v231, %v252
        %v270 = vmul.f32 %v231, %v256
        %v271 = vmul.f32 %v231, %v260
        %v272 = vmul.f32 %v231, %v264
        %v273 = vadd.f32 %v221, %v265
        %v274 = vadd.f32 %v222, %v266
        %v275 = vadd.f32 %v223, %v267
        %v276 = vadd.f32 %v224, %v268
        %v277 = vadd.f32 %v225, %v269
        %v278 = vadd.f32 %v226, %v270
        %v279 = vadd.f32 %v227, %v271
        %v280 = vadd.f32 %v228, %v272
        %281 = vset.pattern.permute.xlu0 2
        %282 = vperm.xlu0 %281, %v183
        %v283 = vpop.permute.xlu0 %282
        %v285 = vlaneseq
        %v286 = vshrl.u32 %v285, 7
        %v287 = vsub.s32 2, %v286
        %v288 = vrot.slane %v175, %v287
        %v289 = vlaneseq
        %v290 = vshrl.u32 %v289, 7
        %v291 = vsub.s32 2, %v290
        %v292 = vrot.slane %v176, %v291
        %v293 = vlaneseq
        %v294 = vshrl.u32 %v293, 7
        %v295 = vsub.s32 2, %v294
        %v296 = vrot.slane %v177, %v295
        %v297 = vlaneseq
        %v298 = vshrl.u32 %v297, 7
        %v299 = vsub.s32 2, %v298
        %v300 = vrot.slane %v178, %v299
        %v301 = vlaneseq
        %v302 = vshrl.u32 %v301, 7
        %v303 = vsub.s32 2, %v302
        %v304 = vrot.slane %v179, %v303
        %v305 = vlaneseq
        %v306 = vshrl.u32 %v305, 7
        %v307 = vsub.s32 2, %v306
        %v308 = vrot.slane %v180, %v307
        %v309 = vlaneseq
        %v310 = vshrl.u32 %v309, 7
        %v311 = vsub.s32 2, %v310
        %v312 = vrot.slane %v181, %v311
        %v313 = vlaneseq
        %v314 = vshrl.u32 %v313, 7
        %v315 = vsub.s32 2, %v314
        %v316 = vrot.slane %v182, %v315
        %v317 = vmul.f32 %v283, %v288
        %v318 = vmul.f32 %v283, %v292
        %v319 = vmul.f32 %v283, %v296
        %v320 = vmul.f32 %v283, %v300
        %v321 = vmul.f32 %v283, %v304
        %v322 = vmul.f32 %v283, %v308
        %v323 = vmul.f32 %v283, %v312
        %v324 = vmul.f32 %v283, %v316
        %v325 = vadd.f32 %v273, %v317
        %v326 = vadd.f32 %v274, %v318
        %v327 = vadd.f32 %v275, %v319
        %v328 = vadd.f32 %v276, %v320
        %v329 = vadd.f32 %v277, %v321
        %v330 = vadd.f32 %v278, %v322
        %v331 = vadd.f32 %v279, %v323
        %v332 = vadd.f32 %v280, %v324
        %333 = vset.pattern.permute.xlu0 3
        %334 = vperm.xlu0 %333, %v183
        %v335 = vpop.permute.xlu0 %334
        %v337 = vlaneseq
        %v338 = vshrl.u32 %v337, 7
        %v339 = vsub.s32 3, %v338
        %v340 = vrot.slane %v175, %v339
        %v341 = vlaneseq
        %v342 = vshrl.u32 %v341, 7
        %v343 = vsub.s32 3, %v342
        %v344 = vrot.slane %v176, %v343
        %v345 = vlaneseq
        %v346 = vshrl.u32 %v345, 7
        %v347 = vsub.s32 3, %v346
        %v348 = vrot.slane %v177, %v347
        %v349 = vlaneseq
        %v350 = vshrl.u32 %v349, 7
        %v351 = vsub.s32 3, %v350
        %v352 = vrot.slane %v178, %v351
        %v353 = vlaneseq
        %v354 = vshrl.u32 %v353, 7
        %v355 = vsub.s32 3, %v354
        %v356 = vrot.slane %v179, %v355
        %v357 = vlaneseq
        %v358 = vshrl.u32 %v357, 7
        %v359 = vsub.s32 3, %v358
        %v360 = vrot.slane %v180, %v359
        %v361 = vlaneseq
        %v362 = vshrl.u32 %v361, 7
        %v363 = vsub.s32 3, %v362
        %v364 = vrot.slane %v181, %v363
        %v365 = vlaneseq
        %v366 = vshrl.u32 %v365, 7
        %v367 = vsub.s32 3, %v366
        %v368 = vrot.slane %v182, %v367
        %v369 = vmul.f32 %v335, %v340
        %v370 = vmul.f32 %v335, %v344
        %v371 = vmul.f32 %v335, %v348
        %v372 = vmul.f32 %v335, %v352
        %v373 = vmul.f32 %v335, %v356
        %v374 = vmul.f32 %v335, %v360
        %v375 = vmul.f32 %v335, %v364
        %v376 = vmul.f32 %v335, %v368
        %v377 = vadd.f32 %v325, %v369
        %v378 = vadd.f32 %v326, %v370
        %v379 = vadd.f32 %v327, %v371
        %v380 = vadd.f32 %v328, %v372
        %v381 = vadd.f32 %v329, %v373
        %v382 = vadd.f32 %v330, %v374
        %v383 = vadd.f32 %v331, %v375
        %v384 = vadd.f32 %v332, %v376
        %385 = vset.pattern.permute.xlu0 4
        %386 = vperm.xlu0 %385, %v183
        %v387 = vpop.permute.xlu0 %386
        %v389 = vlaneseq
        %v390 = vshrl.u32 %v389, 7
        %v391 = vsub.s32 4, %v390
        %v392 = vrot.slane %v175, %v391
        %v393 = vlaneseq
        %v394 = vshrl.u32 %v393, 7
        %v395 = vsub.s32 4, %v394
        %v396 = vrot.slane %v176, %v395
        %v397 = vlaneseq
        %v398 = vshrl.u32 %v397, 7
        %v399 = vsub.s32 4, %v398
        %v400 = vrot.slane %v177, %v399
        %v401 = vlaneseq
        %v402 = vshrl.u32 %v401, 7
        %v403 = vsub.s32 4, %v402
        %v404 = vrot.slane %v178, %v403
        %v405 = vlaneseq
        %v406 = vshrl.u32 %v405, 7
        %v407 = vsub.s32 4, %v406
        %v408 = vrot.slane %v179, %v407
        %v409 = vlaneseq
        %v410 = vshrl.u32 %v409, 7
        %v411 = vsub.s32 4, %v410
        %v412 = vrot.slane %v180, %v411
        %v413 = vlaneseq
        %v414 = vshrl.u32 %v413, 7
        %v415 = vsub.s32 4, %v414
        %v416 = vrot.slane %v181, %v415
        %v417 = vlaneseq
        %v418 = vshrl.u32 %v417, 7
        %v419 = vsub.s32 4, %v418
        %v420 = vrot.slane %v182, %v419
        %v421 = vmul.f32 %v387, %v392
        %v422 = vmul.f32 %v387, %v396
        %v423 = vmul.f32 %v387, %v400
        %v424 = vmul.f32 %v387, %v404
        %v425 = vmul.f32 %v387, %v408
        %v426 = vmul.f32 %v387, %v412
        %v427 = vmul.f32 %v387, %v416
        %v428 = vmul.f32 %v387, %v420
        %v429 = vadd.f32 %v377, %v421
        %v430 = vadd.f32 %v378, %v422
        %v431 = vadd.f32 %v379, %v423
        %v432 = vadd.f32 %v380, %v424
        %v433 = vadd.f32 %v381, %v425
        %v434 = vadd.f32 %v382, %v426
        %v435 = vadd.f32 %v383, %v427
        %v436 = vadd.f32 %v384, %v428
        %437 = vset.pattern.permute.xlu0 5
        %438 = vperm.xlu0 %437, %v183
        %v439 = vpop.permute.xlu0 %438
        %v441 = vlaneseq
        %v442 = vshrl.u32 %v441, 7
        %v443 = vsub.s32 5, %v442
        %v444 = vrot.slane %v175, %v443
        %v445 = vlaneseq
        %v446 = vshrl.u32 %v445, 7
        %v447 = vsub.s32 5, %v446
        %v448 = vrot.slane %v176, %v447
        %v449 = vlaneseq
        %v450 = vshrl.u32 %v449, 7
        %v451 = vsub.s32 5, %v450
        %v452 = vrot.slane %v177, %v451
        %v453 = vlaneseq
        %v454 = vshrl.u32 %v453, 7
        %v455 = vsub.s32 5, %v454
        %v456 = vrot.slane %v178, %v455
        %v457 = vlaneseq
        %v458 = vshrl.u32 %v457, 7
        %v459 = vsub.s32 5, %v458
        %v460 = vrot.slane %v179, %v459
        %v461 = vlaneseq
        %v462 = vshrl.u32 %v461, 7
        %v463 = vsub.s32 5, %v462
        %v464 = vrot.slane %v180, %v463
        %v465 = vlaneseq
        %v466 = vshrl.u32 %v465, 7
        %v467 = vsub.s32 5, %v466
        %v468 = vrot.slane %v181, %v467
        %v469 = vlaneseq
        %v470 = vshrl.u32 %v469, 7
        %v471 = vsub.s32 5, %v470
        %v472 = vrot.slane %v182, %v471
        %v473 = vmul.f32 %v439, %v444
        %v474 = vmul.f32 %v439, %v448
        %v475 = vmul.f32 %v439, %v452
        %v476 = vmul.f32 %v439, %v456
        %v477 = vmul.f32 %v439, %v460
        %v478 = vmul.f32 %v439, %v464
        %v479 = vmul.f32 %v439, %v468
        %v480 = vmul.f32 %v439, %v472
        %v481 = vadd.f32 %v429, %v473
        %v482 = vadd.f32 %v430, %v474
        %v483 = vadd.f32 %v431, %v475
        %v484 = vadd.f32 %v432, %v476
        %v485 = vadd.f32 %v433, %v477
        %v486 = vadd.f32 %v434, %v478
        %v487 = vadd.f32 %v435, %v479
        %v488 = vadd.f32 %v436, %v480
        %489 = vst [vmem:[%s172] sm:$0x3f] %v481
        %490 = vst [vmem:[%s172 + $0x8] sm:$0x3f] %v482
        %491 = vst [vmem:[%s172 + $0x10] sm:$0x3f] %v483
        %492 = vst [vmem:[%s172 + $0x18] sm:$0x3f] %v484
        %493 = vst [vmem:[%s172 + $0x20] sm:$0x3f] %v485
        %494 = vst [vmem:[%s172 + $0x28] sm:$0x3f] %v486
        %495 = vst [vmem:[%s172 + $0x30] sm:$0x3f] %v487
        %496 = vst [vmem:[%s172 + $0x38] sm:$0x3f] %v488
        %s497 = sand.u32 %s75, 1
        %s498 = scalar_lea.sflag [#allocation4], %s497
        %s499 = sand.u32 %s75, 1
        %s500 = smul.addr %s499, 64
        %s501 = scalar_lea.vmem [#allocation7], %s500
        // Predicated region
        $region37: #{tpu_custom_call.1} parent=27 // pred_check
          %p502 = pneg %p85
        $region38: #{tpu_custom_call.1} parent=27 // pred_check_branch
          %504 = sbr.rel (%p502) target = $region40
        $region39: #{tpu_custom_call.1} parent=27 // pred_region
          %s505 = smul.u32 8, %s20
          %s507 = ssub.s32 1024, 1024
          %508 = vsyncadd %s498, %s507
          %s509 = smul.addr %s505, 128
          %s510 = scalar_lea.hbm %s2, %s509
          %s512 = sshll.u32 %s501, 4
          %s513 = int_to_ptr.vmem [resolvable:$true] %s512
          %515 = dma.vmem_to_hbm [thread:$0]  %s513, 1024, %s510, %s498
        $region40: #{tpu_custom_call.1} parent=27 // pred_fallthru
          _
      $region28: #{tpu_custom_call.1} parent=5 // pred_fallthru
        _
      %p516 = scmp.le.s32.totalorder 2, %s15
      // Predicated region
      $region41: #{tpu_custom_call.1} parent=5 // pred_check
        %p517 = pneg %p516
      $region42: #{tpu_custom_call.1} parent=5 // pred_check_branch
        %519 = sbr.rel (%p517) target = $region44
      $region43: #{tpu_custom_call.1} parent=5 // pred_region
        %s520 = ssub.s32 %s15, 2
        // Predicated region
        $region45: #{tpu_custom_call.1} parent=43 // pred_check
          %p521 = pneg %p91
        $region46: #{tpu_custom_call.1} parent=43 // pred_check_branch
          %523 = sbr.rel (%p521) target = $region48
        $region47: #{tpu_custom_call.1} parent=43 // pred_region
          %s524 = sand.u32 %s76, 1
          %s525 = scalar_lea.sflag [#allocation4], %s524
          %s526 = sand.u32 %s76, 1
          %s527 = smul.addr %s526, 64
          %s528 = scalar_lea.vmem [#allocation7], %s527
          %529 = dma.done %s525, 1024
        $region48: #{tpu_custom_call.1} parent=43 // pred_fallthru
          _
      $region44: #{tpu_custom_call.1} parent=5 // pred_fallthru
        _
    $region6: #{tpu_custom_call.1} parent=1 // loop_footer
      %s19 = sadd.s32 1, %s15
    $region7: #{tpu_custom_call.1} parent=1 // loop_footer_branch
      %14 = sbr.rel target = $region3
    $region8: #{tpu_custom_call.1} parent=1 // loop_exit
      _
    %530 = vsyncpa [#allocation3], 1
    %s531 = scalar_lea.sflag [#allocation3], 1
    %532 = vsyncpa %s531, 1
    %533 = vsyncpa [#allocation6], 1
    %s534 = scalar_lea.sflag [#allocation6], 1
    %535 = vsyncpa %s534, 1
    %536 = vsyncpa [#allocation4], 1
    %s537 = scalar_lea.sflag [#allocation4], 1
    %538 = vsyncpa %s537, 1

</llo_original>
